<compile_context>
chip_gen: v5e
topology: v5e:2x2
jax: 0.10.0
libtpu: 0.0.40
codegen_flags: <defaults>
</compile_context>

<pallas_src>
import jax
import jax.numpy as jnp
from jax.experimental import pallas as pl
from jax.experimental.pallas import tpu as pltpu

EPS = 1e-5                     # PyTorch BatchNorm2d default eps
_MAX_TILE_BYTES = 1 << 20      # ~1 MiB per streamed array tile (per buffer)
T_DTYPE = jnp.float32          # set to jnp.bfloat16 only if ~0.4% rel-err is OK


# ---------------------------------------------------------------------------
# Tiling plan over the row (N*C) axis
# ---------------------------------------------------------------------------
def _plan_rows(NC, HW):
    """Return (tm, NC_pad): row-tile size and padded row count it divides."""
    max_rows = max(8, (_MAX_TILE_BYTES // (4 * HW)) // 8 * 8)
    if NC <= max_rows:
        return NC, NC                      # single block (block dim == full dim)
    for t in range(max_rows, 7, -8):
        if NC % t == 0:
            return t, NC
    # No nice divisor: zero-pad rows so a lane/sublane-friendly tile divides.
    tm = max_rows
    return tm, ((NC + tm - 1) // tm) * tm
    # TODO(synk): also tile the lane (H*W) axis for extremely large spatial dims.


def _row_spec(tm, width):
    return pl.BlockSpec((tm, width), lambda i: (i, 0))


# ---------------------------------------------------------------------------
# Pallas kernels
# ---------------------------------------------------------------------------
def _stats4_kernel(a_ref, b_ref, c_ref, d_ref, o_ref):
    # o_ref: (tm, 8) per-row stats:
    #   cols 0,2,4,6 = row sums of wgf,wgx,wf,wx ; cols 1,3,5,7 = centered
    #   sums-of-squares (sum((x - row_mean)^2)), combined per channel on host.
    inv_hw = jnp.float32(1.0 / a_ref.shape[1])
    cols = []
    for r in (a_ref, b_ref, c_ref, d_ref):
        x = r[...]
        s = jnp.sum(x, axis=1, keepdims=True)           # (tm, 1)   XLU
        xc = x - s * inv_hw                              # centered  VPU
        cols.append(s)
        cols.append(jnp.sum(xc * xc, axis=1, keepdims=True))
    o_ref[...] = jnp.concatenate(cols, axis=1)           # single full-tile store


def _gate_kernel(wgf_ref, wgx_ref, wx_ref,
                 s_wgf_ref, s_wgr_ref, sh_gate_ref, s_wx_ref, sh_wx_ref,
                 t_ref, tstat_ref):
    # t = bn_wx(wx) * sigmoid(bn_wgf(wgf) + bn_wgr(wgx)) ; also emit per-row
    # (sum, centered sum-of-squares) of t for gx_bn.
    gate_in = (wgf_ref[...] * s_wgf_ref[...]
               + wgx_ref[...] * s_wgr_ref[...]
               + sh_gate_ref[...])                       # combined shift
    gated = jax.nn.sigmoid(gate_in)                      # EUP
    t = (wx_ref[...] * s_wx_ref[...] + sh_wx_ref[...]) * gated
    t_ref[...] = t.astype(t_ref.dtype)

    inv_hw = jnp.float32(1.0 / t.shape[1])
    s = jnp.sum(t, axis=1, keepdims=True)
    tc = t - s * inv_hw
    tstat_ref[...] = jnp.concatenate(
        [s, jnp.sum(tc * tc, axis=1, keepdims=True)], axis=1)


def _finalize_kernel(wf_ref, t_ref, s_wf_ref, s_gx_ref, sh_fin_ref, o_ref):
    # out = relu(bn_wf(wf) + bn_gx(t)) with pre-combined shift.
    o = (wf_ref[...] * s_wf_ref[...]
         + t_ref[...].astype(jnp.float32) * s_gx_ref[...]
         + sh_fin_ref[...])
    o_ref[...] = jnp.maximum(o, 0.0).astype(o_ref.dtype)


# ---------------------------------------------------------------------------
# pallas_call wrappers (all grid axes fully "parallel" -> megacore friendly)
# ---------------------------------------------------------------------------
def stats4_pallas(a, b, c, d, tm):
    R, HW = a.shape
    spec = _row_spec(tm, HW)
    return pl.pallas_call(
        _stats4_kernel,
        out_shape=jax.ShapeDtypeStruct((R, 8), jnp.float32),
        grid=(R // tm,),
        in_specs=[spec] * 4,
        out_specs=_row_spec(tm, 8),
        compiler_params=pltpu.CompilerParams(
            dimension_semantics=("parallel",)),
    )(a, b, c, d)


def gate_pallas(wgf, wgx, wx, s_wgf, s_wgr, sh_gate, s_wx, sh_wx, tm, t_dtype):
    R, HW = wgf.shape
    spec = _row_spec(tm, HW)
    col = _row_spec(tm, 1)
    return pl.pallas_call(
        _gate_kernel,
        out_shape=(jax.ShapeDtypeStruct((R, HW), t_dtype),
                   jax.ShapeDtypeStruct((R, 2), jnp.float32)),
        grid=(R // tm,),
        in_specs=[spec] * 3 + [col] * 5,
        out_specs=(spec, _row_spec(tm, 2)),
        compiler_params=pltpu.CompilerParams(
            dimension_semantics=("parallel",)),
    )(wgf, wgx, wx, s_wgf, s_wgr, sh_gate, s_wx, sh_wx)


def finalize_pallas(wf, t, s_wf, s_gx, sh_fin, tm, out_dtype):
    R, HW = wf.shape
    spec = _row_spec(tm, HW)
    col = _row_spec(tm, 1)
    return pl.pallas_call(
        _finalize_kernel,
        out_shape=jax.ShapeDtypeStruct((R, HW), out_dtype),
        grid=(R // tm,),
        in_specs=[spec, spec] + [col] * 3,
        out_specs=spec,
        compiler_params=pltpu.CompilerParams(
            dimension_semantics=("parallel",)),
    )(wf, t, s_wf, s_gx, sh_fin)


# ---------------------------------------------------------------------------
# Host-side per-channel reduction (tiny: N*C values per tensor)
# ---------------------------------------------------------------------------
def _scale_shift_from_rows(row_sum, row_css, N, C, HW, gamma, beta):
    """Chan combine of per-row partial stats -> per-channel BN scale/shift."""
    rs = row_sum.reshape(N, C)
    rcss = row_css.reshape(N, C)
    row_mean = rs / HW
    mean = jnp.mean(row_mean, axis=0)                                    # (C,)
    m2 = jnp.sum(rcss, axis=0) + HW * jnp.sum((row_mean - mean) ** 2, axis=0)
    var = m2 / (N * HW)              # biased variance (training-mode normalize)
    scale = gamma * jax.lax.rsqrt(var + EPS)
    shift = beta - mean * scale
    return scale, shift


def _rows_col(vec_c, N, NC_pad):
    """Per-channel vector (C,) -> per-row column (NC_pad, 1); row r -> r % C."""
    col = jnp.tile(vec_c, N)
    if col.shape[0] != NC_pad:
        col = jnp.pad(col, (0, NC_pad - col.shape[0]))
    return col.reshape(NC_pad, 1)


# ---------------------------------------------------------------------------
# _GRCLUnit forward
# ---------------------------------------------------------------------------
@jax.jit
def grcl_unit_forward(wgf, wgx, wf, wx, params):
    N, C, H, W = wgf.shape
    HW = H * W
    NC = N * C
    tm, NC_pad = _plan_rows(NC, HW)

    def view(x):
        v = x.astype(jnp.float32).reshape(NC, HW)   # contiguous, zero-cost view
        if NC_pad != NC:
            v = jnp.pad(v, ((0, NC_pad - NC), (0, 0)))
        return v

    wgf_v, wgx_v, wf_v, wx_v = view(wgf), view(wgx), view(wf), view(wx)

    # Pass 1: per-row partial stats of the four inputs.
    stats = stats4_pallas(wgf_v, wgx_v, wf_v, wx_v, tm)[:NC]     # (NC, 8)

    sc_wgf = _scale_shift_from_rows(stats[:, 0], stats[:, 1], N, C, HW,
                                    *params["wgf_bn"])
    sc_wgr = _scale_shift_from_rows(stats[:, 2], stats[:, 3], N, C, HW,
                                    *params["wgr_bn"])
    sc_wf = _scale_shift_from_rows(stats[:, 4], stats[:, 5], N, C, HW,
                                   *params["wf_bn"])
    sc_wx = _scale_shift_from_rows(stats[:, 6], stats[:, 7], N, C, HW,
                                   *params["wx_bn"])

    col = lambda v: _rows_col(v, N, NC_pad)

    # Pass 2: t = bn_wx(wx) * sigmoid(bn_wgf(wgf) + bn_wgr(wgx)) + t stats.
    t, tstats = gate_pallas(
        wgf_v, wgx_v, wx_v,
        col(sc_wgf[0]), col(sc_wgr[0]), col(sc_wgf[1] + sc_wgr[1]),
        col(sc_wx[0]), col(sc_wx[1]),
        tm, T_DTYPE)
    tstats = tstats[:NC]
    sc_gx = _scale_shift_from_rows(tstats[:, 0], tstats[:, 1], N, C, HW,
                                   *params["gx_bn"])

    # Pass 3: out = relu(bn_wf(wf) + bn_gx(t)).
    out_v = finalize_pallas(
        wf_v, t,
        col(sc_wf[0]), col(sc_gx[0]), col(sc_wf[1] + sc_gx[1]),
        tm, wgf.dtype)
    return out_v[:NC].reshape(N, C, H, W)
    # TODO(synk): PyTorch training-mode BN also updates running_mean/running_var
    # (unbiased) buffers; only the output tensor is reproduced here.


# ---------------------------------------------------------------------------
# Pure-JAX reference (PyTorch training-mode semantics) for correctness check
# ---------------------------------------------------------------------------
def ref_grcl_unit(wgf, wgx, wf, wx, p):
    def bn(a, gamma, beta):
        mean = jnp.mean(a, axis=(0, 2, 3), keepdims=True)
        var = jnp.mean((a - mean) ** 2, axis=(0, 2, 3), keepdims=True)
        return ((a - mean) * jax.lax.rsqrt(var + EPS)
                * gamma.reshape(1, -1, 1, 1) + beta.reshape(1, -1, 1, 1))

    gated = jax.nn.sigmoid(bn(wgf, *p["wgf_bn"]) + bn(wgx, *p["wgr_bn"]))
    return jax.nn.relu(bn(wf, *p["wf_bn"])
                       + bn(bn(wx, *p["wx_bn"]) * gated, *p["gx_bn"]))


def init_params(key, channels):
    names = ("wgf_bn", "wgr_bn", "wf_bn", "wx_bn", "gx_bn")
    keys = jax.random.split(key, len(names))
    p = {}
    for name, k in zip(names, keys):
        k1, k2 = jax.random.split(k)
        gamma = 1.0 + 0.1 * jax.random.normal(k1, (channels,), jnp.float32)
        beta = 0.1 * jax.random.normal(k2, (channels,), jnp.float32)
        p[name] = (gamma, beta)
    return p


if __name__ == "__main__":
    N, C, H, W = 2, 16, 16, 16

    key = jax.random.PRNGKey(0)
    k_in, k_p = jax.random.split(key)
    kw = jax.random.split(k_in, 4)
    wgf = jax.random.normal(kw[0], (N, C, H, W), jnp.float32)
    wgx = jax.random.normal(kw[1], (N, C, H, W), jnp.float32)
    wf = jax.random.normal(kw[2], (N, C, H, W), jnp.float32)
    wx = jax.random.normal(kw[3], (N, C, H, W), jnp.float32)
    params = init_params(k_p, C)

    out = jax.block_until_ready(grcl_unit_forward(wgf, wgx, wf, wx, params))
    ref = jax.block_until_ready(ref_grcl_unit(wgf, wgx, wf, wx, params))

    assert out.shape == (N, C, H, W)
    max_err = float(jnp.max(jnp.abs(out - ref)))
    if max_err > 1e-3:
        raise AssertionError(f"Pallas output mismatch vs reference: {max_err}")

    print("KERNEL_OK")
</pallas_src>

<mosaic_0001>
module attributes {stable_mosaic.version = 11 : i64} {
  func.func @_stats4_kernel(%arg0: i32, %arg1: memref<32x256xf32, #tpu.memory_space<vmem>>, %arg2: memref<32x256xf32, #tpu.memory_space<vmem>>, %arg3: memref<32x256xf32, #tpu.memory_space<vmem>>, %arg4: memref<32x256xf32, #tpu.memory_space<vmem>>, %arg5: memref<32x8xf32, #tpu.memory_space<vmem>>) attributes {dimension_semantics = [#tpu.dimension_semantics<parallel>], iteration_bounds = array<i64: 1>, scalar_prefetch = 0 : i64, scratch_operands = 0 : i64, tpu.core_type = #tpu.core_type<tc>, window_params = [{transform_indices = @transform_0, window_bounds = array<i64: 32, 256>}, {transform_indices = @transform_1, window_bounds = array<i64: 32, 256>}, {transform_indices = @transform_2, window_bounds = array<i64: 32, 256>}, {transform_indices = @transform_3, window_bounds = array<i64: 32, 256>}, {transform_indices = @transform_4, window_bounds = array<i64: 32, 8>}]} {
    %c0 = arith.constant 0 : index
    %c0_0 = arith.constant 0 : index
    %0 = vector.load %arg1[%c0, %c0_0] : memref<32x256xf32, #tpu.memory_space<vmem>>, vector<32x256xf32>
    %cst = arith.constant dense<0.000000e+00> : vector<32xf32>
    %1 = vector.multi_reduction <add>, %0, %cst [1] : vector<32x256xf32> to vector<32xf32>
    %2 = vector.shape_cast %1 : vector<32xf32> to vector<32x1xf32>
    %cst_1 = arith.constant 3.906250e-03 : f32
    %3 = vector.broadcast %cst_1 : f32 to vector<32x1xf32>
    %4 = arith.mulf %2, %3 : vector<32x1xf32>
    %5 = vector.broadcast %4 : vector<32x1xf32> to vector<32x256xf32>
    %6 = arith.subf %0, %5 : vector<32x256xf32>
    %7 = arith.mulf %6, %6 : vector<32x256xf32>
    %cst_2 = arith.constant dense<0.000000e+00> : vector<32xf32>
    %8 = vector.multi_reduction <add>, %7, %cst_2 [1] : vector<32x256xf32> to vector<32xf32>
    %9 = vector.shape_cast %8 : vector<32xf32> to vector<32x1xf32>
    %c0_3 = arith.constant 0 : index
    %c0_4 = arith.constant 0 : index
    %10 = vector.load %arg2[%c0_3, %c0_4] : memref<32x256xf32, #tpu.memory_space<vmem>>, vector<32x256xf32>
    %cst_5 = arith.constant dense<0.000000e+00> : vector<32xf32>
    %11 = vector.multi_reduction <add>, %10, %cst_5 [1] : vector<32x256xf32> to vector<32xf32>
    %12 = vector.shape_cast %11 : vector<32xf32> to vector<32x1xf32>
    %cst_6 = arith.constant 3.906250e-03 : f32
    %13 = vector.broadcast %cst_6 : f32 to vector<32x1xf32>
    %14 = arith.mulf %12, %13 : vector<32x1xf32>
    %15 = vector.broadcast %14 : vector<32x1xf32> to vector<32x256xf32>
    %16 = arith.subf %10, %15 : vector<32x256xf32>
    %17 = arith.mulf %16, %16 : vector<32x256xf32>
    %cst_7 = arith.constant dense<0.000000e+00> : vector<32xf32>
    %18 = vector.multi_reduction <add>, %17, %cst_7 [1] : vector<32x256xf32> to vector<32xf32>
    %19 = vector.shape_cast %18 : vector<32xf32> to vector<32x1xf32>
    %c0_8 = arith.constant 0 : index
    %c0_9 = arith.constant 0 : index
    %20 = vector.load %arg3[%c0_8, %c0_9] : memref<32x256xf32, #tpu.memory_space<vmem>>, vector<32x256xf32>
    %cst_10 = arith.constant dense<0.000000e+00> : vector<32xf32>
    %21 = vector.multi_reduction <add>, %20, %cst_10 [1] : vector<32x256xf32> to vector<32xf32>
    %22 = vector.shape_cast %21 : vector<32xf32> to vector<32x1xf32>
    %cst_11 = arith.constant 3.906250e-03 : f32
    %23 = vector.broadcast %cst_11 : f32 to vector<32x1xf32>
    %24 = arith.mulf %22, %23 : vector<32x1xf32>
    %25 = vector.broadcast %24 : vector<32x1xf32> to vector<32x256xf32>
    %26 = arith.subf %20, %25 : vector<32x256xf32>
    %27 = arith.mulf %26, %26 : vector<32x256xf32>
    %cst_12 = arith.constant dense<0.000000e+00> : vector<32xf32>
    %28 = vector.multi_reduction <add>, %27, %cst_12 [1] : vector<32x256xf32> to vector<32xf32>
    %29 = vector.shape_cast %28 : vector<32xf32> to vector<32x1xf32>
    %c0_13 = arith.constant 0 : index
    %c0_14 = arith.constant 0 : index
    %30 = vector.load %arg4[%c0_13, %c0_14] : memref<32x256xf32, #tpu.memory_space<vmem>>, vector<32x256xf32>
    %cst_15 = arith.constant dense<0.000000e+00> : vector<32xf32>
    %31 = vector.multi_reduction <add>, %30, %cst_15 [1] : vector<32x256xf32> to vector<32xf32>
    %32 = vector.shape_cast %31 : vector<32xf32> to vector<32x1xf32>
    %cst_16 = arith.constant 3.906250e-03 : f32
    %33 = vector.broadcast %cst_16 : f32 to vector<32x1xf32>
    %34 = arith.mulf %32, %33 : vector<32x1xf32>
    %35 = vector.broadcast %34 : vector<32x1xf32> to vector<32x256xf32>
    %36 = arith.subf %30, %35 : vector<32x256xf32>
    %37 = arith.mulf %36, %36 : vector<32x256xf32>
    %cst_17 = arith.constant dense<0.000000e+00> : vector<32xf32>
    %38 = vector.multi_reduction <add>, %37, %cst_17 [1] : vector<32x256xf32> to vector<32xf32>
    %39 = vector.shape_cast %38 : vector<32xf32> to vector<32x1xf32>
    %40 = tpu.concatenate %2, %9, %12, %19, %22, %29, %32, %39 in 1 : vector<32x1xf32>, vector<32x1xf32>, vector<32x1xf32>, vector<32x1xf32>, vector<32x1xf32>, vector<32x1xf32>, vector<32x1xf32>, vector<32x1xf32> -> vector<32x8xf32>
    %c0_18 = arith.constant 0 : index
    %c0_19 = arith.constant 0 : index
    %41 = vector.load %arg5[%c0_18, %c0_19] : memref<32x8xf32, #tpu.memory_space<vmem>>, vector<32x8xf32>
    tpu.vector_store %arg5[%c0_18, %c0_19], %40 {strides = array<i32>} : memref<32x8xf32, #tpu.memory_space<vmem>>, vector<32x8xf32>,
    return
  }
  func.func @transform_0(%arg0: i32) -> (i32, i32) {
    %c0_i32 = arith.constant 0 : i32
    %c0_i32_0 = arith.constant 0 : i32
    return %arg0, %c0_i32 : i32, i32
  }
  func.func @transform_1(%arg0: i32) -> (i32, i32) {
    %c0_i32 = arith.constant 0 : i32
    %c0_i32_0 = arith.constant 0 : i32
    return %arg0, %c0_i32 : i32, i32
  }
  func.func @transform_2(%arg0: i32) -> (i32, i32) {
    %c0_i32 = arith.constant 0 : i32
    %c0_i32_0 = arith.constant 0 : i32
    return %arg0, %c0_i32 : i32, i32
  }
  func.func @transform_3(%arg0: i32) -> (i32, i32) {
    %c0_i32 = arith.constant 0 : i32
    %c0_i32_0 = arith.constant 0 : i32
    return %arg0, %c0_i32 : i32, i32
  }
  func.func @transform_4(%arg0: i32) -> (i32, i32) {
    %c0_i32 = arith.constant 0 : i32
    %c0_i32_0 = arith.constant 0 : i32
    return %arg0, %c0_i32 : i32, i32
  }
}

module attributes {stable_mosaic.version = 11 : i64} {
  func.func @_finalize_kernel(%arg0: i32, %arg1: memref<32x256xf32, #tpu.memory_space<vmem>>, %arg2: memref<32x256xf32, #tpu.memory_space<vmem>>, %arg3: memref<32x1xf32, #tpu.memory_space<vmem>>, %arg4: memref<32x1xf32, #tpu.memory_space<vmem>>, %arg5: memref<32x1xf32, #tpu.memory_space<vmem>>, %arg6: memref<32x256xf32, #tpu.memory_space<vmem>>) attributes {dimension_semantics = [#tpu.dimension_semantics<parallel>], iteration_bounds = array<i64: 1>, scalar_prefetch = 0 : i64, scratch_operands = 0 : i64, tpu.core_type = #tpu.core_type<tc>, window_params = [{transform_indices = @transform_0, window_bounds = array<i64: 32, 256>}, {transform_indices = @transform_1, window_bounds = array<i64: 32, 256>}, {transform_indices = @transform_2, window_bounds = array<i64: 32, 1>}, {transform_indices = @transform_3, window_bounds = array<i64: 32, 1>}, {transform_indices = @transform_4, window_bounds = array<i64: 32, 1>}, {transform_indices = @transform_5, window_bounds = array<i64: 32, 256>}]} {
    %c0 = arith.constant 0 : index
    %c0_0 = arith.constant 0 : index
    %0 = vector.load %arg1[%c0, %c0_0] : memref<32x256xf32, #tpu.memory_space<vmem>>, vector<32x256xf32>
    %c0_1 = arith.constant 0 : index
    %c0_2 = arith.constant 0 : index
    %1 = vector.load %arg3[%c0_1, %c0_2] : memref<32x1xf32, #tpu.memory_space<vmem>>, vector<32x1xf32>
    %2 = vector.broadcast %1 : vector<32x1xf32> to vector<32x256xf32>
    %3 = arith.mulf %0, %2 : vector<32x256xf32>
    %c0_3 = arith.constant 0 : index
    %c0_4 = arith.constant 0 : index
    %4 = vector.load %arg2[%c0_3, %c0_4] : memref<32x256xf32, #tpu.memory_space<vmem>>, vector<32x256xf32>
    %c0_5 = arith.constant 0 : index
    %c0_6 = arith.constant 0 : index
    %5 = vector.load %arg4[%c0_5, %c0_6] : memref<32x1xf32, #tpu.memory_space<vmem>>, vector<32x1xf32>
    %6 = vector.broadcast %5 : vector<32x1xf32> to vector<32x256xf32>
    %7 = arith.mulf %4, %6 : vector<32x256xf32>
    %8 = arith.addf %3, %7 : vector<32x256xf32>
    %c0_7 = arith.constant 0 : index
    %c0_8 = arith.constant 0 : index
    %9 = vector.load %arg5[%c0_7, %c0_8] : memref<32x1xf32, #tpu.memory_space<vmem>>, vector<32x1xf32>
    %10 = vector.broadcast %9 : vector<32x1xf32> to vector<32x256xf32>
    %11 = arith.addf %8, %10 : vector<32x256xf32>
    %cst = arith.constant 0.000000e+00 : f32
    %12 = vector.broadcast %cst : f32 to vector<32x256xf32>
    %13 = arith.maximumf %11, %12 : vector<32x256xf32>
    %c0_9 = arith.constant 0 : index
    %c0_10 = arith.constant 0 : index
    %14 = vector.load %arg6[%c0_9, %c0_10] : memref<32x256xf32, #tpu.memory_space<vmem>>, vector<32x256xf32>
    tpu.vector_store %arg6[%c0_9, %c0_10], %13 {strides = array<i32>} : memref<32x256xf32, #tpu.memory_space<vmem>>, vector<32x256xf32>,
    return
  }
  func.func @transform_0(%arg0: i32) -> (i32, i32) {
    %c0_i32 = arith.constant 0 : i32
    %c0_i32_0 = arith.constant 0 : i32
    return %arg0, %c0_i32 : i32, i32
  }
  func.func @transform_1(%arg0: i32) -> (i32, i32) {
    %c0_i32 = arith.constant 0 : i32
    %c0_i32_0 = arith.constant 0 : i32
    return %arg0, %c0_i32 : i32, i32
  }
  func.func @transform_2(%arg0: i32) -> (i32, i32) {
    %c0_i32 = arith.constant 0 : i32
    %c0_i32_0 = arith.constant 0 : i32
    return %arg0, %c0_i32 : i32, i32
  }
  func.func @transform_3(%arg0: i32) -> (i32, i32) {
    %c0_i32 = arith.constant 0 : i32
    %c0_i32_0 = arith.constant 0 : i32
    return %arg0, %c0_i32 : i32, i32
  }
  func.func @transform_4(%arg0: i32) -> (i32, i32) {
    %c0_i32 = arith.constant 0 : i32
    %c0_i32_0 = arith.constant 0 : i32
    return %arg0, %c0_i32 : i32, i32
  }
  func.func @transform_5(%arg0: i32) -> (i32, i32) {
    %c0_i32 = arith.constant 0 : i32
    %c0_i32_0 = arith.constant 0 : i32
    return %arg0, %c0_i32 : i32, i32
  }
}

module attributes {stable_mosaic.version = 11 : i64} {
  func.func @_gate_kernel(%arg0: i32, %arg1: memref<32x256xf32, #tpu.memory_space<vmem>>, %arg2: memref<32x256xf32, #tpu.memory_space<vmem>>, %arg3: memref<32x256xf32, #tpu.memory_space<vmem>>, %arg4: memref<32x1xf32, #tpu.memory_space<vmem>>, %arg5: memref<32x1xf32, #tpu.memory_space<vmem>>, %arg6: memref<32x1xf32, #tpu.memory_space<vmem>>, %arg7: memref<32x1xf32, #tpu.memory_space<vmem>>, %arg8: memref<32x1xf32, #tpu.memory_space<vmem>>, %arg9: memref<32x256xf32, #tpu.memory_space<vmem>>, %arg10: memref<32x2xf32, #tpu.memory_space<vmem>>) attributes {dimension_semantics = [#tpu.dimension_semantics<parallel>], iteration_bounds = array<i64: 1>, scalar_prefetch = 0 : i64, scratch_operands = 0 : i64, tpu.core_type = #tpu.core_type<tc>, window_params = [{transform_indices = @transform_0, window_bounds = array<i64: 32, 256>}, {transform_indices = @transform_1, window_bounds = array<i64: 32, 256>}, {transform_indices = @transform_2, window_bounds = array<i64: 32, 256>}, {transform_indices = @transform_3, window_bounds = array<i64: 32, 1>}, {transform_indices = @transform_4, window_bounds = array<i64: 32, 1>}, {transform_indices = @transform_5, window_bounds = array<i64: 32, 1>}, {transform_indices = @transform_6, window_bounds = array<i64: 32, 1>}, {transform_indices = @transform_7, window_bounds = array<i64: 32, 1>}, {transform_indices = @transform_8, window_bounds = array<i64: 32, 256>}, {transform_indices = @transform_9, window_bounds = array<i64: 32, 2>}]} {
    %c0 = arith.constant 0 : index
    %c0_0 = arith.constant 0 : index
    %0 = vector.load %arg1[%c0, %c0_0] : memref<32x256xf32, #tpu.memory_space<vmem>>, vector<32x256xf32>
    %c0_1 = arith.constant 0 : index
    %c0_2 = arith.constant 0 : index
    %1 = vector.load %arg4[%c0_1, %c0_2] : memref<32x1xf32, #tpu.memory_space<vmem>>, vector<32x1xf32>
    %2 = vector.broadcast %1 : vector<32x1xf32> to vector<32x256xf32>
    %3 = arith.mulf %0, %2 : vector<32x256xf32>
    %c0_3 = arith.constant 0 : index
    %c0_4 = arith.constant 0 : index
    %4 = vector.load %arg2[%c0_3, %c0_4] : memref<32x256xf32, #tpu.memory_space<vmem>>, vector<32x256xf32>
    %c0_5 = arith.constant 0 : index
    %c0_6 = arith.constant 0 : index
    %5 = vector.load %arg5[%c0_5, %c0_6] : memref<32x1xf32, #tpu.memory_space<vmem>>, vector<32x1xf32>
    %6 = vector.broadcast %5 : vector<32x1xf32> to vector<32x256xf32>
    %7 = arith.mulf %4, %6 : vector<32x256xf32>
    %8 = arith.addf %3, %7 : vector<32x256xf32>
    %c0_7 = arith.constant 0 : index
    %c0_8 = arith.constant 0 : index
    %9 = vector.load %arg6[%c0_7, %c0_8] : memref<32x1xf32, #tpu.memory_space<vmem>>, vector<32x1xf32>
    %10 = vector.broadcast %9 : vector<32x1xf32> to vector<32x256xf32>
    %11 = arith.addf %8, %10 : vector<32x256xf32>
    %12 = arith.negf %11 : vector<32x256xf32>
    %13 = math.exp %12 : vector<32x256xf32>
    %cst = arith.constant 1.000000e+00 : f32
    %14 = vector.broadcast %cst : f32 to vector<32x256xf32>
    %15 = arith.addf %14, %13 : vector<32x256xf32>
    %16 = arith.divf %14, %15 : vector<32x256xf32>
    %c0_9 = arith.constant 0 : index
    %c0_10 = arith.constant 0 : index
    %17 = vector.load %arg3[%c0_9, %c0_10] : memref<32x256xf32, #tpu.memory_space<vmem>>, vector<32x256xf32>
    %c0_11 = arith.constant 0 : index
    %c0_12 = arith.constant 0 : index
    %18 = vector.load %arg7[%c0_11, %c0_12] : memref<32x1xf32, #tpu.memory_space<vmem>>, vector<32x1xf32>
    %19 = vector.broadcast %18 : vector<32x1xf32> to vector<32x256xf32>
    %20 = arith.mulf %17, %19 : vector<32x256xf32>
    %c0_13 = arith.constant 0 : index
    %c0_14 = arith.constant 0 : index
    %21 = vector.load %arg8[%c0_13, %c0_14] : memref<32x1xf32, #tpu.memory_space<vmem>>, vector<32x1xf32>
    %22 = vector.broadcast %21 : vector<32x1xf32> to vector<32x256xf32>
    %23 = arith.addf %20, %22 : vector<32x256xf32>
    %24 = arith.mulf %23, %16 : vector<32x256xf32>
    %c0_15 = arith.constant 0 : index
    %c0_16 = arith.constant 0 : index
    %25 = vector.load %arg9[%c0_15, %c0_16] : memref<32x256xf32, #tpu.memory_space<vmem>>, vector<32x256xf32>
    tpu.vector_store %arg9[%c0_15, %c0_16], %24 {strides = array<i32>} : memref<32x256xf32, #tpu.memory_space<vmem>>, vector<32x256xf32>,
    %cst_17 = arith.constant dense<0.000000e+00> : vector<32xf32>
    %26 = vector.multi_reduction <add>, %24, %cst_17 [1] : vector<32x256xf32> to vector<32xf32>
    %27 = vector.shape_cast %26 : vector<32xf32> to vector<32x1xf32>
    %cst_18 = arith.constant 3.906250e-03 : f32
    %28 = vector.broadcast %cst_18 : f32 to vector<32x1xf32>
    %29 = arith.mulf %27, %28 : vector<32x1xf32>
    %30 = vector.broadcast %29 : vector<32x1xf32> to vector<32x256xf32>
    %31 = arith.subf %24, %30 : vector<32x256xf32>
    %32 = arith.mulf %31, %31 : vector<32x256xf32>
    %cst_19 = arith.constant dense<0.000000e+00> : vector<32xf32>
    %33 = vector.multi_reduction <add>, %32, %cst_19 [1] : vector<32x256xf32> to vector<32xf32>
    %34 = vector.shape_cast %33 : vector<32xf32> to vector<32x1xf32>
    %35 = tpu.concatenate %27, %34 in 1 : vector<32x1xf32>, vector<32x1xf32> -> vector<32x2xf32>
    %c0_20 = arith.constant 0 : index
    %c0_21 = arith.constant 0 : index
    %36 = vector.load %arg10[%c0_20, %c0_21] : memref<32x2xf32, #tpu.memory_space<vmem>>, vector<32x2xf32>
    tpu.vector_store %arg10[%c0_20, %c0_21], %35 {strides = array<i32>} : memref<32x2xf32, #tpu.memory_space<vmem>>, vector<32x2xf32>,
    return
  }
  func.func @transform_0(%arg0: i32) -> (i32, i32) {
    %c0_i32 = arith.constant 0 : i32
    %c0_i32_0 = arith.constant 0 : i32
    return %arg0, %c0_i32 : i32, i32
  }
  func.func @transform_1(%arg0: i32) -> (i32, i32) {
    %c0_i32 = arith.constant 0 : i32
    %c0_i32_0 = arith.constant 0 : i32
    return %arg0, %c0_i32 : i32, i32
  }
  func.func @transform_2(%arg0: i32) -> (i32, i32) {
    %c0_i32 = arith.constant 0 : i32
    %c0_i32_0 = arith.constant 0 : i32
    return %arg0, %c0_i32 : i32, i32
  }
  func.func @transform_3(%arg0: i32) -> (i32, i32) {
    %c0_i32 = arith.constant 0 : i32
    %c0_i32_0 = arith.constant 0 : i32
    return %arg0, %c0_i32 : i32, i32
  }
  func.func @transform_4(%arg0: i32) -> (i32, i32) {
    %c0_i32 = arith.constant 0 : i32
    %c0_i32_0 = arith.constant 0 : i32
    return %arg0, %c0_i32 : i32, i32
  }
  func.func @transform_5(%arg0: i32) -> (i32, i32) {
    %c0_i32 = arith.constant 0 : i32
    %c0_i32_0 = arith.constant 0 : i32
    return %arg0, %c0_i32 : i32, i32
  }
  func.func @transform_6(%arg0: i32) -> (i32, i32) {
    %c0_i32 = arith.constant 0 : i32
    %c0_i32_0 = arith.constant 0 : i32
    return %arg0, %c0_i32 : i32, i32
  }
  func.func @transform_7(%arg0: i32) -> (i32, i32) {
    %c0_i32 = arith.constant 0 : i32
    %c0_i32_0 = arith.constant 0 : i32
    return %arg0, %c0_i32 : i32, i32
  }
  func.func @transform_8(%arg0: i32) -> (i32, i32) {
    %c0_i32 = arith.constant 0 : i32
    %c0_i32_0 = arith.constant 0 : i32
    return %arg0, %c0_i32 : i32, i32
  }
  func.func @transform_9(%arg0: i32) -> (i32, i32) {
    %c0_i32 = arith.constant 0 : i32
    %c0_i32_0 = arith.constant 0 : i32
    return %arg0, %c0_i32 : i32, i32
  }
}

</mosaic_0001>

<llo_original>
// kernel: tile.63
$region0: #{tile.63}
  #allocation0 [shape = 's32[1]{0}', space=sflag, size = 0x4, scoped, tag = 'scoped memory for tile.63']
  %s0 = inlined_call_operand.vmem [shape: f32[16], index: 0, kind: input, shape index: {}]
  %s1 = inlined_call_operand.vmem [shape: f32[2,16], index: 1, kind: output, shape index: {}]
  // Predicated region
  $region2: #{tile.63} parent=0 // pred_check
    _
  $region3: #{tile.63} parent=0 // pred_check_branch
    %3 = sbr.rel (0) target = $region5
  $region4: #{tile.63} parent=0 // pred_region
    _
  $region5: #{tile.63} parent=0 // pred_fallthru
    _
  %v4 = vld [vmem:[%s0] ss:$0 sm:$0xff]
  %5 = vst [vmem:[%s1] sm:$0x3] %v4

// kernel: tile.0
$region0: #{tile.0}
  %s0 = inlined_call_operand.vmem [shape: f32[2,16], index: 0, kind: input, shape index: {}]
  %s1 = inlined_call_operand.vmem [shape: f32[32,1], index: 1, kind: output, shape index: {}]
  $region1: #{tile.0} parent=0
    #allocation0 [shape = 'u8[4096]{0}', space=vmem, size = 0x1000, scoped, tag = 'scoped mem for input reshape']
    %s3 = ssub.s32 4, 1
    %v4 = vld [vmem:[%s0] sm:%s3]
    %5 = vst [vmem:[#allocation0] sm:%s3] %v4
    %v6 = vld [vmem:[#allocation0] sm:$0x3]
    %vm7 = vcmask 7168
    %8 = vst.msk [vmem:[%s1] ss:$16 sm:$0x3] %vm7, %v6
    %v9 = vld [vmem:[#allocation0] sm:$0x3]
    %10 = vrot.lane.b32.xlu0 %v9, 127
    %v11 = vpop.permute.xlu0 %10
    %vm12 = vcmask 7168
    %s13 = scalar_lea.vmem %s1, 1
    %14 = vst.msk [vmem:[%s13] ss:$16 sm:$0x3] %vm12, %v11
    %v15 = vld [vmem:[#allocation0] sm:$0x3]
    %16 = vrot.lane.b32.xlu0 %v15, 126
    %v17 = vpop.permute.xlu0 %16
    %vm18 = vcmask 7168
    %s19 = scalar_lea.vmem %s1, 2
    %20 = vst.msk [vmem:[%s19] ss:$16 sm:$0x3] %vm18, %v17
    %v21 = vld [vmem:[#allocation0] sm:$0x3]
    %22 = vrot.lane.b32.xlu0 %v21, 125
    %v23 = vpop.permute.xlu0 %22
    %vm24 = vcmask 7168
    %s25 = scalar_lea.vmem %s1, 3
    %26 = vst.msk [vmem:[%s25] ss:$16 sm:$0x3] %vm24, %v23
    %v27 = vld [vmem:[#allocation0] sm:$0x3]
    %28 = vrot.lane.b32.xlu0 %v27, 124
    %v29 = vpop.permute.xlu0 %28
    %vm30 = vcmask 7168
    %s31 = scalar_lea.vmem %s1, 4
    %32 = vst.msk [vmem:[%s31] ss:$16 sm:$0x3] %vm30, %v29
    %v33 = vld [vmem:[#allocation0] sm:$0x3]
    %34 = vrot.lane.b32.xlu0 %v33, 123
    %v35 = vpop.permute.xlu0 %34
    %vm36 = vcmask 7168
    %s37 = scalar_lea.vmem %s1, 5
    %38 = vst.msk [vmem:[%s37] ss:$16 sm:$0x3] %vm36, %v35
    %v39 = vld [vmem:[#allocation0] sm:$0x3]
    %40 = vrot.lane.b32.xlu0 %v39, 122
    %v41 = vpop.permute.xlu0 %40
    %vm42 = vcmask 7168
    %s43 = scalar_lea.vmem %s1, 6
    %44 = vst.msk [vmem:[%s43] ss:$16 sm:$0x3] %vm42, %v41
    %v45 = vld [vmem:[#allocation0] sm:$0x3]
    %46 = vrot.lane.b32.xlu0 %v45, 121
    %v47 = vpop.permute.xlu0 %46
    %vm48 = vcmask 7168
    %s49 = scalar_lea.vmem %s1, 7
    %50 = vst.msk [vmem:[%s49] ss:$16 sm:$0x3] %vm48, %v47
    %v51 = vld [vmem:[#allocation0] sm:$0x3]
    %52 = vrot.lane.b32.xlu0 %v51, 120
    %v53 = vpop.permute.xlu0 %52
    %vm54 = vcmask 7168
    %s55 = scalar_lea.vmem %s1, 8
    %56 = vst.msk [vmem:[%s55] ss:$16 sm:$0x3] %vm54, %v53
    %v57 = vld [vmem:[#allocation0] sm:$0x3]
    %58 = vrot.lane.b32.xlu0 %v57, 119
    %v59 = vpop.permute.xlu0 %58
    %vm60 = vcmask 7168
    %s61 = scalar_lea.vmem %s1, 9
    %62 = vst.msk [vmem:[%s61] ss:$16 sm:$0x3] %vm60, %v59
    %v63 = vld [vmem:[#allocation0] sm:$0x3]
    %64 = vrot.lane.b32.xlu0 %v63, 118
    %v65 = vpop.permute.xlu0 %64
    %vm66 = vcmask 7168
    %s67 = scalar_lea.vmem %s1, 10
    %68 = vst.msk [vmem:[%s67] ss:$16 sm:$0x3] %vm66, %v65
    %v69 = vld [vmem:[#allocation0] sm:$0x3]
    %70 = vrot.lane.b32.xlu0 %v69, 117
    %v71 = vpop.permute.xlu0 %70
    %vm72 = vcmask 7168
    %s73 = scalar_lea.vmem %s1, 11
    %74 = vst.msk [vmem:[%s73] ss:$16 sm:$0x3] %vm72, %v71
    %v75 = vld [vmem:[#allocation0] sm:$0x3]
    %76 = vrot.lane.b32.xlu0 %v75, 116
    %v77 = vpop.permute.xlu0 %76
    %vm78 = vcmask 7168
    %s79 = scalar_lea.vmem %s1, 12
    %80 = vst.msk [vmem:[%s79] ss:$16 sm:$0x3] %vm78, %v77
    %v81 = vld [vmem:[#allocation0] sm:$0x3]
    %82 = vrot.lane.b32.xlu0 %v81, 115
    %v83 = vpop.permute.xlu0 %82
    %vm84 = vcmask 7168
    %s85 = scalar_lea.vmem %s1, 13
    %86 = vst.msk [vmem:[%s85] ss:$16 sm:$0x3] %vm84, %v83
    %v87 = vld [vmem:[#allocation0] sm:$0x3]
    %88 = vrot.lane.b32.xlu0 %v87, 114
    %v89 = vpop.permute.xlu0 %88
    %vm90 = vcmask 7168
    %s91 = scalar_lea.vmem %s1, 14
    %92 = vst.msk [vmem:[%s91] ss:$16 sm:$0x3] %vm90, %v89
    %v93 = vld [vmem:[#allocation0] sm:$0x3]
    %94 = vrot.lane.b32.xlu0 %v93, 113
    %v95 = vpop.permute.xlu0 %94
    %vm96 = vcmask 7168
    %s97 = scalar_lea.vmem %s1, 15
    %98 = vst.msk [vmem:[%s97] ss:$16 sm:$0x3] %vm96, %v95

// kernel: grcl_unit_forward.3
$region0: #{grcl_unit_forward.3}
  #allocation0 [shape = 'u32[]', space=smem, size = 0x4, offset = 0x4, fixed_abs, tag = 'smem constant byte address 0x4 - core index']
  #allocation1 [shape = 'u32[72,128]{1,0:T(1,128)}', space=vmem, size = 0x9000, scoped, tag = 'internal scratch']
  %s0 = inlined_call_operand.vmem [shape: f32[32,256], index: 0, kind: input, shape index: {}]
  %s1 = inlined_call_operand.vmem [shape: f32[32,256], index: 1, kind: input, shape index: {}]
  %s2 = inlined_call_operand.vmem [shape: f32[32,256], index: 2, kind: input, shape index: {}]
  %s3 = inlined_call_operand.vmem [shape: f32[32,256], index: 3, kind: input, shape index: {}]
  %s4 = inlined_call_operand.vmem [shape: f32[32,8], index: 4, kind: output, shape index: {}]
  %s5 = sld [smem:[#allocation0]]
  $region26: #{grcl_unit_forward.3} parent=0
    _
  %s7 = ssub.s32 1, %s5
  %s8 = scalar_select 0, %s7, %s5
  // Predicated region
  $region2: #{grcl_unit_forward.3} parent=0 // pred_check
    _
  $region3: #{grcl_unit_forward.3} parent=0 // pred_check_branch
    %10 = sbr.rel (0) target = $region5
  $region4: #{grcl_unit_forward.3} parent=0 // pred_region
    _
  $region5: #{grcl_unit_forward.3} parent=0 // pred_fallthru
    _
  // Predicated region
  $region6: #{grcl_unit_forward.3} parent=0 // pred_check
    _
  $region7: #{grcl_unit_forward.3} parent=0 // pred_check_branch
    %12 = sbr.rel (0) target = $region9
  $region8: #{grcl_unit_forward.3} parent=0 // pred_region
    _
  $region9: #{grcl_unit_forward.3} parent=0 // pred_fallthru
    _
  // Predicated region
  $region10: #{grcl_unit_forward.3} parent=0 // pred_check
    _
  $region11: #{grcl_unit_forward.3} parent=0 // pred_check_branch
    %14 = sbr.rel (0) target = $region13
  $region12: #{grcl_unit_forward.3} parent=0 // pred_region
    _
  $region13: #{grcl_unit_forward.3} parent=0 // pred_fallthru
    _
  // Predicated region
  $region14: #{grcl_unit_forward.3} parent=0 // pred_check
    _
  $region15: #{grcl_unit_forward.3} parent=0 // pred_check_branch
    %16 = sbr.rel (0) target = $region17
  $region16: #{grcl_unit_forward.3} parent=0 // pred_region
    _
  $region17: #{grcl_unit_forward.3} parent=0 // pred_fallthru
    _
  %v17 = vld [vmem:[%s0] sm:$0xff]
  %v18 = vld [vmem:[%s0 + $0x8] sm:$0xff]
  %v19 = vld [vmem:[%s0 + $0x10] sm:$0xff]
  %v20 = vld [vmem:[%s0 + $0x18] sm:$0xff]
  %v21 = vld [vmem:[%s0 + $0x20] sm:$0xff]
  %v22 = vld [vmem:[%s0 + $0x28] sm:$0xff]
  %v23 = vld [vmem:[%s0 + $0x30] sm:$0xff]
  %v24 = vld [vmem:[%s0 + $0x38] sm:$0xff]
  %v25 = vadd.f32 %v17, %v18
  %26 = vadd.xlane.f32.xlu0 %v25
  %v27 = vpop.xlane.xlu0 %26
  %v28 = vadd.f32 %v19, %v20
  %29 = vadd.xlane.f32.xlu0 %v28
  %v30 = vpop.xlane.xlu0 %29
  %v31 = vadd.f32 %v21, %v22
  %32 = vadd.xlane.f32.xlu0 %v31
  %v33 = vpop.xlane.xlu0 %32
  %v34 = vadd.f32 %v23, %v24
  %35 = vadd.xlane.f32.xlu0 %v34
  %v36 = vpop.xlane.xlu0 %35
  %v37 = vmul.f32 %v27, 0.00390625
  %v38 = vmul.f32 %v30, 0.00390625
  %v39 = vmul.f32 %v33, 0.00390625
  %v40 = vmul.f32 %v36, 0.00390625
  %v41 = vsub.f32 %v17, %v37
  %v42 = vsub.f32 %v18, %v37
  %v43 = vsub.f32 %v19, %v38
  %v44 = vsub.f32 %v20, %v38
  %v45 = vsub.f32 %v21, %v39
  %v46 = vsub.f32 %v22, %v39
  %v47 = vsub.f32 %v23, %v40
  %v48 = vsub.f32 %v24, %v40
  %v49 = vmul.f32 %v41, %v41
  %v50 = vmul.f32 %v42, %v42
  %v51 = vmul.f32 %v43, %v43
  %v52 = vmul.f32 %v44, %v44
  %v53 = vmul.f32 %v45, %v45
  %v54 = vmul.f32 %v46, %v46
  %v55 = vmul.f32 %v47, %v47
  %v56 = vmul.f32 %v48, %v48
  %v57 = vadd.f32 %v49, %v50
  %58 = vadd.xlane.f32.xlu0 %v57
  %v59 = vpop.xlane.xlu0 %58
  %v60 = vadd.f32 %v51, %v52
  %61 = vadd.xlane.f32.xlu0 %v60
  %v62 = vpop.xlane.xlu0 %61
  %v63 = vadd.f32 %v53, %v54
  %64 = vadd.xlane.f32.xlu0 %v63
  %v65 = vpop.xlane.xlu0 %64
  %v66 = vadd.f32 %v55, %v56
  %67 = vadd.xlane.f32.xlu0 %v66
  %v68 = vpop.xlane.xlu0 %67
  %v69 = vld [vmem:[%s1] sm:$0xff]
  %v70 = vld [vmem:[%s1 + $0x8] sm:$0xff]
  %v71 = vld [vmem:[%s1 + $0x10] sm:$0xff]
  %v72 = vld [vmem:[%s1 + $0x18] sm:$0xff]
  %v73 = vld [vmem:[%s1 + $0x20] sm:$0xff]
  %v74 = vld [vmem:[%s1 + $0x28] sm:$0xff]
  %v75 = vld [vmem:[%s1 + $0x30] sm:$0xff]
  %v76 = vld [vmem:[%s1 + $0x38] sm:$0xff]
  %v77 = vadd.f32 %v69, %v70
  %78 = vadd.xlane.f32.xlu0 %v77
  %v79 = vpop.xlane.xlu0 %78
  %v80 = vadd.f32 %v71, %v72
  %81 = vadd.xlane.f32.xlu0 %v80
  %v82 = vpop.xlane.xlu0 %81
  %v83 = vadd.f32 %v73, %v74
  %84 = vadd.xlane.f32.xlu0 %v83
  %v85 = vpop.xlane.xlu0 %84
  %v86 = vadd.f32 %v75, %v76
  %87 = vadd.xlane.f32.xlu0 %v86
  %v88 = vpop.xlane.xlu0 %87
  %v89 = vmul.f32 %v79, 0.00390625
  %v90 = vmul.f32 %v82, 0.00390625
  %v91 = vmul.f32 %v85, 0.00390625
  %v92 = vmul.f32 %v88, 0.00390625
  %v93 = vsub.f32 %v69, %v89
  %v94 = vsub.f32 %v70, %v89
  %v95 = vsub.f32 %v71, %v90
  %v96 = vsub.f32 %v72, %v90
  %v97 = vsub.f32 %v73, %v91
  %v98 = vsub.f32 %v74, %v91
  %v99 = vsub.f32 %v75, %v92
  %v100 = vsub.f32 %v76, %v92
  %v101 = vmul.f32 %v93, %v93
  %v102 = vmul.f32 %v94, %v94
  %v103 = vmul.f32 %v95, %v95
  %v104 = vmul.f32 %v96, %v96
  %v105 = vmul.f32 %v97, %v97
  %v106 = vmul.f32 %v98, %v98
  %v107 = vmul.f32 %v99, %v99
  %v108 = vmul.f32 %v100, %v100
  %v109 = vadd.f32 %v101, %v102
  %110 = vadd.xlane.f32.xlu0 %v109
  %v111 = vpop.xlane.xlu0 %110
  %v112 = vadd.f32 %v103, %v104
  %113 = vadd.xlane.f32.xlu0 %v112
  %v114 = vpop.xlane.xlu0 %113
  %v115 = vadd.f32 %v105, %v106
  %116 = vadd.xlane.f32.xlu0 %v115
  %v117 = vpop.xlane.xlu0 %116
  %v118 = vadd.f32 %v107, %v108
  %119 = vadd.xlane.f32.xlu0 %v118
  %v120 = vpop.xlane.xlu0 %119
  %v121 = vld [vmem:[%s2] sm:$0xff]
  %v122 = vld [vmem:[%s2 + $0x8] sm:$0xff]
  %v123 = vld [vmem:[%s2 + $0x10] sm:$0xff]
  %v124 = vld [vmem:[%s2 + $0x18] sm:$0xff]
  %v125 = vld [vmem:[%s2 + $0x20] sm:$0xff]
  %v126 = vld [vmem:[%s2 + $0x28] sm:$0xff]
  %v127 = vld [vmem:[%s2 + $0x30] sm:$0xff]
  %v128 = vld [vmem:[%s2 + $0x38] sm:$0xff]
  %v129 = vadd.f32 %v121, %v122
  %130 = vadd.xlane.f32.xlu0 %v129
  %v131 = vpop.xlane.xlu0 %130
  %v132 = vadd.f32 %v123, %v124
  %133 = vadd.xlane.f32.xlu0 %v132
  %v134 = vpop.xlane.xlu0 %133
  %v135 = vadd.f32 %v125, %v126
  %136 = vadd.xlane.f32.xlu0 %v135
  %v137 = vpop.xlane.xlu0 %136
  %v138 = vadd.f32 %v127, %v128
  %139 = vadd.xlane.f32.xlu0 %v138
  %v140 = vpop.xlane.xlu0 %139
  %v141 = vmul.f32 %v131, 0.00390625
  %v142 = vmul.f32 %v134, 0.00390625
  %v143 = vmul.f32 %v137, 0.00390625
  %v144 = vmul.f32 %v140, 0.00390625
  %v145 = vsub.f32 %v121, %v141
  %v146 = vsub.f32 %v122, %v141
  %v147 = vsub.f32 %v123, %v142
  %v148 = vsub.f32 %v124, %v142
  %v149 = vsub.f32 %v125, %v143
  %v150 = vsub.f32 %v126, %v143
  %v151 = vsub.f32 %v127, %v144
  %v152 = vsub.f32 %v128, %v144
  %v153 = vmul.f32 %v145, %v145
  %v154 = vmul.f32 %v146, %v146
  %v155 = vmul.f32 %v147, %v147
  %v156 = vmul.f32 %v148, %v148
  %v157 = vmul.f32 %v149, %v149
  %v158 = vmul.f32 %v150, %v150
  %v159 = vmul.f32 %v151, %v151
  %v160 = vmul.f32 %v152, %v152
  %v161 = vadd.f32 %v153, %v154
  %162 = vadd.xlane.f32.xlu0 %v161
  %v163 = vpop.xlane.xlu0 %162
  %v164 = vadd.f32 %v155, %v156
  %165 = vadd.xlane.f32.xlu0 %v164
  %v166 = vpop.xlane.xlu0 %165
  %v167 = vadd.f32 %v157, %v158
  %168 = vadd.xlane.f32.xlu0 %v167
  %v169 = vpop.xlane.xlu0 %168
  %v170 = vadd.f32 %v159, %v160
  %171 = vadd.xlane.f32.xlu0 %v170
  %v172 = vpop.xlane.xlu0 %171
  %v173 = vld [vmem:[%s3] sm:$0xff]
  %v174 = vld [vmem:[%s3 + $0x8] sm:$0xff]
  %v175 = vld [vmem:[%s3 + $0x10] sm:$0xff]
  %v176 = vld [vmem:[%s3 + $0x18] sm:$0xff]
  %v177 = vld [vmem:[%s3 + $0x20] sm:$0xff]
  %v178 = vld [vmem:[%s3 + $0x28] sm:$0xff]
  %v179 = vld [vmem:[%s3 + $0x30] sm:$0xff]
  %v180 = vld [vmem:[%s3 + $0x38] sm:$0xff]
  %v181 = vadd.f32 %v173, %v174
  %182 = vadd.xlane.f32.xlu0 %v181
  %v183 = vpop.xlane.xlu0 %182
  %v184 = vadd.f32 %v175, %v176
  %185 = vadd.xlane.f32.xlu0 %v184
  %v186 = vpop.xlane.xlu0 %185
  %v187 = vadd.f32 %v177, %v178
  %188 = vadd.xlane.f32.xlu0 %v187
  %v189 = vpop.xlane.xlu0 %188
  %v190 = vadd.f32 %v179, %v180
  %191 = vadd.xlane.f32.xlu0 %v190
  %v192 = vpop.xlane.xlu0 %191
  %v193 = vmul.f32 %v183, 0.00390625
  %v194 = vmul.f32 %v186, 0.00390625
  %v195 = vmul.f32 %v189, 0.00390625
  %v196 = vmul.f32 %v192, 0.00390625
  %v197 = vsub.f32 %v173, %v193
  %v198 = vsub.f32 %v174, %v193
  %v199 = vsub.f32 %v175, %v194
  %v200 = vsub.f32 %v176, %v194
  %v201 = vsub.f32 %v177, %v195
  %v202 = vsub.f32 %v178, %v195
  %v203 = vsub.f32 %v179, %v196
  %v204 = vsub.f32 %v180, %v196
  %v205 = vmul.f32 %v197, %v197
  %v206 = vmul.f32 %v198, %v198
  %v207 = vmul.f32 %v199, %v199
  %v208 = vmul.f32 %v200, %v200
  %v209 = vmul.f32 %v201, %v201
  %v210 = vmul.f32 %v202, %v202
  %v211 = vmul.f32 %v203, %v203
  %v212 = vmul.f32 %v204, %v204
  %v213 = vadd.f32 %v205, %v206
  %214 = vadd.xlane.f32.xlu0 %v213
  %v215 = vpop.xlane.xlu0 %214
  %v216 = vadd.f32 %v207, %v208
  %217 = vadd.xlane.f32.xlu0 %v216
  %v218 = vpop.xlane.xlu0 %217
  %v219 = vadd.f32 %v209, %v210
  %220 = vadd.xlane.f32.xlu0 %v219
  %v221 = vpop.xlane.xlu0 %220
  %v222 = vadd.f32 %v211, %v212
  %223 = vadd.xlane.f32.xlu0 %v222
  %v224 = vpop.xlane.xlu0 %223
  %vm225 = vcmask 7168
  %v226 = vsel %vm225, %v27, %v59
  %v227 = vsel %vm225, %v30, %v62
  %v228 = vsel %vm225, %v33, %v65
  %v229 = vsel %vm225, %v36, %v68
  %vm230 = vcmask 15360
  %v231 = vsel %vm230, %v226, %v79
  %v232 = vsel %vm230, %v227, %v82
  %v233 = vsel %vm230, %v228, %v85
  %v234 = vsel %vm230, %v229, %v88
  %vm235 = vcmask 23552
  %v236 = vsel %vm235, %v231, %v111
  %v237 = vsel %vm235, %v232, %v114
  %v238 = vsel %vm235, %v233, %v117
  %v239 = vsel %vm235, %v234, %v120
  %vm240 = vcmask 31744
  %v241 = vsel %vm240, %v236, %v131
  %v242 = vsel %vm240, %v237, %v134
  %v243 = vsel %vm240, %v238, %v137
  %v244 = vsel %vm240, %v239, %v140
  %vm245 = vcmask 39936
  %v246 = vsel %vm245, %v241, %v163
  %v247 = vsel %vm245, %v242, %v166
  %v248 = vsel %vm245, %v243, %v169
  %v249 = vsel %vm245, %v244, %v172
  %vm250 = vcmask 48128
  %v251 = vsel %vm250, %v246, %v183
  %v252 = vsel %vm250, %v247, %v186
  %v253 = vsel %vm250, %v248, %v189
  %v254 = vsel %vm250, %v249, %v192
  %vm255 = vcmask 56320
  %v256 = vsel %vm255, %v251, %v215
  %v257 = vsel %vm255, %v252, %v218
  %v258 = vsel %vm255, %v253, %v221
  %v259 = vsel %vm255, %v254, %v224
  %vm260 = vcmask 64512
  %261 = vst.msk [vmem:[%s4] sm:$0xff] %vm260, %v256
  %262 = vst.msk [vmem:[%s4 + $0x8] sm:$0xff] %vm260, %v257
  %263 = vst.msk [vmem:[%s4 + $0x10] sm:$0xff] %vm260, %v258
  %264 = vst.msk [vmem:[%s4 + $0x18] sm:$0xff] %vm260, %v259
  // Predicated region
  $region18: #{grcl_unit_forward.3} parent=0 // pred_check
    _
  $region19: #{grcl_unit_forward.3} parent=0 // pred_check_branch
    %266 = sbr.rel (0) target = $region21
  $region20: #{grcl_unit_forward.3} parent=0 // pred_region
    _
  $region21: #{grcl_unit_forward.3} parent=0 // pred_fallthru
    _
  // Predicated region
  $region22: #{grcl_unit_forward.3} parent=0 // pred_check
    _
  $region23: #{grcl_unit_forward.3} parent=0 // pred_check_branch
    %268 = sbr.rel (0) target = $region25
  $region24: #{grcl_unit_forward.3} parent=0 // pred_region
    _
  $region25: #{grcl_unit_forward.3} parent=0 // pred_fallthru
    _

// kernel: grcl_unit_forward.5
$region0: #{grcl_unit_forward.5}
  #allocation0 [shape = 'u32[]', space=smem, size = 0x4, offset = 0x4, fixed_abs, tag = 'smem constant byte address 0x4 - core index']
  #allocation1 [shape = 'u32[72,128]{1,0:T(1,128)}', space=vmem, size = 0x9000, scoped, tag = 'internal scratch']
  %s0 = inlined_call_operand.vmem [shape: f32[32,256], index: 0, kind: input, shape index: {}]
  %s1 = inlined_call_operand.vmem [shape: f32[32,256], index: 1, kind: input, shape index: {}]
  %s2 = inlined_call_operand.vmem [shape: f32[32,1], index: 2, kind: input, shape index: {}]
  %s3 = inlined_call_operand.vmem [shape: f32[32,1], index: 3, kind: input, shape index: {}]
  %s4 = inlined_call_operand.vmem [shape: f32[32,1], index: 4, kind: input, shape index: {}]
  %s5 = inlined_call_operand.vmem [shape: f32[32,256], index: 5, kind: output, shape index: {}]
  %s6 = sld [smem:[#allocation0]]
  $region30: #{grcl_unit_forward.5} parent=0
    _
  %s8 = ssub.s32 1, %s6
  %s9 = scalar_select 0, %s8, %s6
  // Predicated region
  $region2: #{grcl_unit_forward.5} parent=0 // pred_check
    _
  $region3: #{grcl_unit_forward.5} parent=0 // pred_check_branch
    %11 = sbr.rel (0) target = $region5
  $region4: #{grcl_unit_forward.5} parent=0 // pred_region
    _
  $region5: #{grcl_unit_forward.5} parent=0 // pred_fallthru
    _
  // Predicated region
  $region6: #{grcl_unit_forward.5} parent=0 // pred_check
    _
  $region7: #{grcl_unit_forward.5} parent=0 // pred_check_branch
    %13 = sbr.rel (0) target = $region9
  $region8: #{grcl_unit_forward.5} parent=0 // pred_region
    _
  $region9: #{grcl_unit_forward.5} parent=0 // pred_fallthru
    _
  // Predicated region
  $region10: #{grcl_unit_forward.5} parent=0 // pred_check
    _
  $region11: #{grcl_unit_forward.5} parent=0 // pred_check_branch
    %15 = sbr.rel (0) target = $region13
  $region12: #{grcl_unit_forward.5} parent=0 // pred_region
    _
  $region13: #{grcl_unit_forward.5} parent=0 // pred_fallthru
    _
  // Predicated region
  $region14: #{grcl_unit_forward.5} parent=0 // pred_check
    _
  $region15: #{grcl_unit_forward.5} parent=0 // pred_check_branch
    %17 = sbr.rel (0) target = $region17
  $region16: #{grcl_unit_forward.5} parent=0 // pred_region
    _
  $region17: #{grcl_unit_forward.5} parent=0 // pred_fallthru
    _
  // Predicated region
  $region18: #{grcl_unit_forward.5} parent=0 // pred_check
    _
  $region19: #{grcl_unit_forward.5} parent=0 // pred_check_branch
    %19 = sbr.rel (0) target = $region21
  $region20: #{grcl_unit_forward.5} parent=0 // pred_region
    _
  $region21: #{grcl_unit_forward.5} parent=0 // pred_fallthru
    _
  %v20 = vld [vmem:[%s0] sm:$0xff]
  %v21 = vld [vmem:[%s0 + $0x8] sm:$0xff]
  %v22 = vld [vmem:[%s0 + $0x10] sm:$0xff]
  %v23 = vld [vmem:[%s0 + $0x18] sm:$0xff]
  %v24 = vld [vmem:[%s0 + $0x20] sm:$0xff]
  %v25 = vld [vmem:[%s0 + $0x28] sm:$0xff]
  %v26 = vld [vmem:[%s0 + $0x30] sm:$0xff]
  %v27 = vld [vmem:[%s0 + $0x38] sm:$0xff]
  %v28 = vld [vmem:[%s2] sm:$0xff]
  %v29 = vld [vmem:[%s2 + $0x8] sm:$0xff]
  %v30 = vld [vmem:[%s2 + $0x10] sm:$0xff]
  %v31 = vld [vmem:[%s2 + $0x18] sm:$0xff]
  %33 = vset.pattern.permute.xlu0 0
  %34 = vperm.xlu0 %33, %v28
  %v35 = vpop.permute.xlu0 %34
  %38 = vset.pattern.permute.xlu0 0
  %39 = vperm.xlu0 %38, %v29
  %v40 = vpop.permute.xlu0 %39
  %43 = vset.pattern.permute.xlu0 0
  %44 = vperm.xlu0 %43, %v30
  %v45 = vpop.permute.xlu0 %44
  %48 = vset.pattern.permute.xlu0 0
  %49 = vperm.xlu0 %48, %v31
  %v50 = vpop.permute.xlu0 %49
  %v52 = vmul.f32 %v20, %v35
  %v53 = vmul.f32 %v21, %v35
  %v54 = vmul.f32 %v22, %v40
  %v55 = vmul.f32 %v23, %v40
  %v56 = vmul.f32 %v24, %v45
  %v57 = vmul.f32 %v25, %v45
  %v58 = vmul.f32 %v26, %v50
  %v59 = vmul.f32 %v27, %v50
  %v60 = vld [vmem:[%s1] sm:$0xff]
  %v61 = vld [vmem:[%s1 + $0x8] sm:$0xff]
  %v62 = vld [vmem:[%s1 + $0x10] sm:$0xff]
  %v63 = vld [vmem:[%s1 + $0x18] sm:$0xff]
  %v64 = vld [vmem:[%s1 + $0x20] sm:$0xff]
  %v65 = vld [vmem:[%s1 + $0x28] sm:$0xff]
  %v66 = vld [vmem:[%s1 + $0x30] sm:$0xff]
  %v67 = vld [vmem:[%s1 + $0x38] sm:$0xff]
  %v68 = vld [vmem:[%s3] sm:$0xff]
  %v69 = vld [vmem:[%s3 + $0x8] sm:$0xff]
  %v70 = vld [vmem:[%s3 + $0x10] sm:$0xff]
  %v71 = vld [vmem:[%s3 + $0x18] sm:$0xff]
  %73 = vset.pattern.permute.xlu0 0
  %74 = vperm.xlu0 %73, %v68
  %v75 = vpop.permute.xlu0 %74
  %78 = vset.pattern.permute.xlu0 0
  %79 = vperm.xlu0 %78, %v69
  %v80 = vpop.permute.xlu0 %79
  %83 = vset.pattern.permute.xlu0 0
  %84 = vperm.xlu0 %83, %v70
  %v85 = vpop.permute.xlu0 %84
  %88 = vset.pattern.permute.xlu0 0
  %89 = vperm.xlu0 %88, %v71
  %v90 = vpop.permute.xlu0 %89
  %v92 = vmul.f32 %v60, %v75
  %v93 = vmul.f32 %v61, %v75
  %v94 = vmul.f32 %v62, %v80
  %v95 = vmul.f32 %v63, %v80
  %v96 = vmul.f32 %v64, %v85
  %v97 = vmul.f32 %v65, %v85
  %v98 = vmul.f32 %v66, %v90
  %v99 = vmul.f32 %v67, %v90
  %v100 = vadd.f32 %v52, %v92
  %v101 = vadd.f32 %v53, %v93
  %v102 = vadd.f32 %v54, %v94
  %v103 = vadd.f32 %v55, %v95
  %v104 = vadd.f32 %v56, %v96
  %v105 = vadd.f32 %v57, %v97
  %v106 = vadd.f32 %v58, %v98
  %v107 = vadd.f32 %v59, %v99
  %v108 = vld [vmem:[%s4] sm:$0xff]
  %v109 = vld [vmem:[%s4 + $0x8] sm:$0xff]
  %v110 = vld [vmem:[%s4 + $0x10] sm:$0xff]
  %v111 = vld [vmem:[%s4 + $0x18] sm:$0xff]
  %113 = vset.pattern.permute.xlu0 0
  %114 = vperm.xlu0 %113, %v108
  %v115 = vpop.permute.xlu0 %114
  %118 = vset.pattern.permute.xlu0 0
  %119 = vperm.xlu0 %118, %v109
  %v120 = vpop.permute.xlu0 %119
  %123 = vset.pattern.permute.xlu0 0
  %124 = vperm.xlu0 %123, %v110
  %v125 = vpop.permute.xlu0 %124
  %128 = vset.pattern.permute.xlu0 0
  %129 = vperm.xlu0 %128, %v111
  %v130 = vpop.permute.xlu0 %129
  %v132 = vadd.f32 %v100, %v115
  %v133 = vadd.f32 %v101, %v115
  %v134 = vadd.f32 %v102, %v120
  %v135 = vadd.f32 %v103, %v120
  %v136 = vadd.f32 %v104, %v125
  %v137 = vadd.f32 %v105, %v125
  %v138 = vadd.f32 %v106, %v130
  %v139 = vadd.f32 %v107, %v130
  %v140 = vmax.f32 %v132, 0.0
  %v141 = vmax.f32 %v133, 0.0
  %v142 = vmax.f32 %v134, 0.0
  %v143 = vmax.f32 %v135, 0.0
  %v144 = vmax.f32 %v136, 0.0
  %v145 = vmax.f32 %v137, 0.0
  %v146 = vmax.f32 %v138, 0.0
  %v147 = vmax.f32 %v139, 0.0
  %148 = vst [vmem:[%s5] sm:$0xff] %v140
  %149 = vst [vmem:[%s5 + $0x8] sm:$0xff] %v141
  %150 = vst [vmem:[%s5 + $0x10] sm:$0xff] %v142
  %151 = vst [vmem:[%s5 + $0x18] sm:$0xff] %v143
  %152 = vst [vmem:[%s5 + $0x20] sm:$0xff] %v144
  %153 = vst [vmem:[%s5 + $0x28] sm:$0xff] %v145
  %154 = vst [vmem:[%s5 + $0x30] sm:$0xff] %v146
  %155 = vst [vmem:[%s5 + $0x38] sm:$0xff] %v147
  // Predicated region
  $region22: #{grcl_unit_forward.5} parent=0 // pred_check
    _
  $region23: #{grcl_unit_forward.5} parent=0 // pred_check_branch
    %157 = sbr.rel (0) target = $region25
  $region24: #{grcl_unit_forward.5} parent=0 // pred_region
    _
  $region25: #{grcl_unit_forward.5} parent=0 // pred_fallthru
    _
  // Predicated region
  $region26: #{grcl_unit_forward.5} parent=0 // pred_check
    _
  $region27: #{grcl_unit_forward.5} parent=0 // pred_check_branch
    %159 = sbr.rel (0) target = $region29
  $region28: #{grcl_unit_forward.5} parent=0 // pred_region
    _
  $region29: #{grcl_unit_forward.5} parent=0 // pred_fallthru
    _

// kernel: grcl_unit_forward.4
$region0: #{grcl_unit_forward.4}
  #allocation0 [shape = 'u32[]', space=smem, size = 0x4, offset = 0x4, fixed_abs, tag = 'smem constant byte address 0x4 - core index']
  #allocation1 [shape = 'u32[72,128]{1,0:T(1,128)}', space=vmem, size = 0x9000, scoped, tag = 'internal scratch']
  %s0 = inlined_call_operand.vmem [shape: f32[32,256], index: 0, kind: input, shape index: {}]
  %s1 = inlined_call_operand.vmem [shape: f32[32,256], index: 1, kind: input, shape index: {}]
  %s2 = inlined_call_operand.vmem [shape: f32[32,256], index: 2, kind: input, shape index: {}]
  %s3 = inlined_call_operand.vmem [shape: f32[32,1], index: 3, kind: input, shape index: {}]
  %s4 = inlined_call_operand.vmem [shape: f32[32,1], index: 4, kind: input, shape index: {}]
  %s5 = inlined_call_operand.vmem [shape: f32[32,1], index: 5, kind: input, shape index: {}]
  %s6 = inlined_call_operand.vmem [shape: f32[32,1], index: 6, kind: input, shape index: {}]
  %s7 = inlined_call_operand.vmem [shape: f32[32,1], index: 7, kind: input, shape index: {}]
  %s8 = inlined_call_operand.vmem [shape: f32[32,256], index: 8, kind: output, shape index: {0}]
  %s9 = inlined_call_operand.vmem [shape: f32[32,2], index: 9, kind: output, shape index: {1}]
  %10 = xla_tuple %s8, %s9
  %s11 = sld [smem:[#allocation0]]
  $region50: #{grcl_unit_forward.4} parent=0
    _
  %s13 = ssub.s32 1, %s11
  %s14 = scalar_select 0, %s13, %s11
  // Predicated region
  $region2: #{grcl_unit_forward.4} parent=0 // pred_check
    _
  $region3: #{grcl_unit_forward.4} parent=0 // pred_check_branch
    %16 = sbr.rel (0) target = $region5
  $region4: #{grcl_unit_forward.4} parent=0 // pred_region
    _
  $region5: #{grcl_unit_forward.4} parent=0 // pred_fallthru
    _
  // Predicated region
  $region6: #{grcl_unit_forward.4} parent=0 // pred_check
    _
  $region7: #{grcl_unit_forward.4} parent=0 // pred_check_branch
    %18 = sbr.rel (0) target = $region9
  $region8: #{grcl_unit_forward.4} parent=0 // pred_region
    _
  $region9: #{grcl_unit_forward.4} parent=0 // pred_fallthru
    _
  // Predicated region
  $region10: #{grcl_unit_forward.4} parent=0 // pred_check
    _
  $region11: #{grcl_unit_forward.4} parent=0 // pred_check_branch
    %20 = sbr.rel (0) target = $region13
  $region12: #{grcl_unit_forward.4} parent=0 // pred_region
    _
  $region13: #{grcl_unit_forward.4} parent=0 // pred_fallthru
    _
  // Predicated region
  $region14: #{grcl_unit_forward.4} parent=0 // pred_check
    _
  $region15: #{grcl_unit_forward.4} parent=0 // pred_check_branch
    %22 = sbr.rel (0) target = $region17
  $region16: #{grcl_unit_forward.4} parent=0 // pred_region
    _
  $region17: #{grcl_unit_forward.4} parent=0 // pred_fallthru
    _
  // Predicated region
  $region18: #{grcl_unit_forward.4} parent=0 // pred_check
    _
  $region19: #{grcl_unit_forward.4} parent=0 // pred_check_branch
    %24 = sbr.rel (0) target = $region21
  $region20: #{grcl_unit_forward.4} parent=0 // pred_region
    _
  $region21: #{grcl_unit_forward.4} parent=0 // pred_fallthru
    _
  // Predicated region
  $region22: #{grcl_unit_forward.4} parent=0 // pred_check
    _
  $region23: #{grcl_unit_forward.4} parent=0 // pred_check_branch
    %26 = sbr.rel (0) target = $region25
  $region24: #{grcl_unit_forward.4} parent=0 // pred_region
    _
  $region25: #{grcl_unit_forward.4} parent=0 // pred_fallthru
    _
  // Predicated region
  $region26: #{grcl_unit_forward.4} parent=0 // pred_check
    _
  $region27: #{grcl_unit_forward.4} parent=0 // pred_check_branch
    %28 = sbr.rel (0) target = $region29
  $region28: #{grcl_unit_forward.4} parent=0 // pred_region
    _
  $region29: #{grcl_unit_forward.4} parent=0 // pred_fallthru
    _
  // Predicated region
  $region30: #{grcl_unit_forward.4} parent=0 // pred_check
    _
  $region31: #{grcl_unit_forward.4} parent=0 // pred_check_branch
    %30 = sbr.rel (0) target = $region33
  $region32: #{grcl_unit_forward.4} parent=0 // pred_region
    _
  $region33: #{grcl_unit_forward.4} parent=0 // pred_fallthru
    _
  %v31 = vld [vmem:[%s0] sm:$0xff]
  %v32 = vld [vmem:[%s0 + $0x8] sm:$0xff]
  %v33 = vld [vmem:[%s0 + $0x10] sm:$0xff]
  %v34 = vld [vmem:[%s0 + $0x18] sm:$0xff]
  %v35 = vld [vmem:[%s0 + $0x20] sm:$0xff]
  %v36 = vld [vmem:[%s0 + $0x28] sm:$0xff]
  %v37 = vld [vmem:[%s0 + $0x30] sm:$0xff]
  %v38 = vld [vmem:[%s0 + $0x38] sm:$0xff]
  %v39 = vld [vmem:[%s3] sm:$0xff]
  %v40 = vld [vmem:[%s3 + $0x8] sm:$0xff]
  %v41 = vld [vmem:[%s3 + $0x10] sm:$0xff]
  %v42 = vld [vmem:[%s3 + $0x18] sm:$0xff]
  %44 = vset.pattern.permute.xlu0 0
  %45 = vperm.xlu0 %44, %v39
  %v46 = vpop.permute.xlu0 %45
  %49 = vset.pattern.permute.xlu0 0
  %50 = vperm.xlu0 %49, %v40
  %v51 = vpop.permute.xlu0 %50
  %54 = vset.pattern.permute.xlu0 0
  %55 = vperm.xlu0 %54, %v41
  %v56 = vpop.permute.xlu0 %55
  %59 = vset.pattern.permute.xlu0 0
  %60 = vperm.xlu0 %59, %v42
  %v61 = vpop.permute.xlu0 %60
  %v63 = vmul.f32 %v31, %v46
  %v64 = vmul.f32 %v32, %v46
  %v65 = vmul.f32 %v33, %v51
  %v66 = vmul.f32 %v34, %v51
  %v67 = vmul.f32 %v35, %v56
  %v68 = vmul.f32 %v36, %v56
  %v69 = vmul.f32 %v37, %v61
  %v70 = vmul.f32 %v38, %v61
  %v71 = vld [vmem:[%s1] sm:$0xff]
  %v72 = vld [vmem:[%s1 + $0x8] sm:$0xff]
  %v73 = vld [vmem:[%s1 + $0x10] sm:$0xff]
  %v74 = vld [vmem:[%s1 + $0x18] sm:$0xff]
  %v75 = vld [vmem:[%s1 + $0x20] sm:$0xff]
  %v76 = vld [vmem:[%s1 + $0x28] sm:$0xff]
  %v77 = vld [vmem:[%s1 + $0x30] sm:$0xff]
  %v78 = vld [vmem:[%s1 + $0x38] sm:$0xff]
  %v79 = vld [vmem:[%s4] sm:$0xff]
  %v80 = vld [vmem:[%s4 + $0x8] sm:$0xff]
  %v81 = vld [vmem:[%s4 + $0x10] sm:$0xff]
  %v82 = vld [vmem:[%s4 + $0x18] sm:$0xff]
  %84 = vset.pattern.permute.xlu0 0
  %85 = vperm.xlu0 %84, %v79
  %v86 = vpop.permute.xlu0 %85
  %89 = vset.pattern.permute.xlu0 0
  %90 = vperm.xlu0 %89, %v80
  %v91 = vpop.permute.xlu0 %90
  %94 = vset.pattern.permute.xlu0 0
  %95 = vperm.xlu0 %94, %v81
  %v96 = vpop.permute.xlu0 %95
  %99 = vset.pattern.permute.xlu0 0
  %100 = vperm.xlu0 %99, %v82
  %v101 = vpop.permute.xlu0 %100
  %v103 = vmul.f32 %v71, %v86
  %v104 = vmul.f32 %v72, %v86
  %v105 = vmul.f32 %v73, %v91
  %v106 = vmul.f32 %v74, %v91
  %v107 = vmul.f32 %v75, %v96
  %v108 = vmul.f32 %v76, %v96
  %v109 = vmul.f32 %v77, %v101
  %v110 = vmul.f32 %v78, %v101
  %v111 = vadd.f32 %v63, %v103
  %v112 = vadd.f32 %v64, %v104
  %v113 = vadd.f32 %v65, %v105
  %v114 = vadd.f32 %v66, %v106
  %v115 = vadd.f32 %v67, %v107
  %v116 = vadd.f32 %v68, %v108
  %v117 = vadd.f32 %v69, %v109
  %v118 = vadd.f32 %v70, %v110
  %v119 = vld [vmem:[%s5] sm:$0xff]
  %v120 = vld [vmem:[%s5 + $0x8] sm:$0xff]
  %v121 = vld [vmem:[%s5 + $0x10] sm:$0xff]
  %v122 = vld [vmem:[%s5 + $0x18] sm:$0xff]
  %124 = vset.pattern.permute.xlu0 0
  %125 = vperm.xlu0 %124, %v119
  %v126 = vpop.permute.xlu0 %125
  %129 = vset.pattern.permute.xlu0 0
  %130 = vperm.xlu0 %129, %v120
  %v131 = vpop.permute.xlu0 %130
  %134 = vset.pattern.permute.xlu0 0
  %135 = vperm.xlu0 %134, %v121
  %v136 = vpop.permute.xlu0 %135
  %139 = vset.pattern.permute.xlu0 0
  %140 = vperm.xlu0 %139, %v122
  %v141 = vpop.permute.xlu0 %140
  %v143 = vadd.f32 %v111, %v126
  %v144 = vadd.f32 %v112, %v126
  %v145 = vadd.f32 %v113, %v131
  %v146 = vadd.f32 %v114, %v131
  %v147 = vadd.f32 %v115, %v136
  %v148 = vadd.f32 %v116, %v136
  %v149 = vadd.f32 %v117, %v141
  %v150 = vadd.f32 %v118, %v141
  %v151 = vxor.u32 %v143, 2147483648
  %v152 = vxor.u32 %v144, 2147483648
  %v153 = vxor.u32 %v145, 2147483648
  %v154 = vxor.u32 %v146, 2147483648
  %v155 = vxor.u32 %v147, 2147483648
  %v156 = vxor.u32 %v148, 2147483648
  %v157 = vxor.u32 %v149, 2147483648
  %v158 = vxor.u32 %v150, 2147483648
  %v159 = vmul.f32 %v151, 1.442695
  %v160 = vpow.pop %v159
  %v161 = vmul.f32 %v152, 1.442695
  %v162 = vpow.pop %v161
  %v163 = vmul.f32 %v153, 1.442695
  %v164 = vpow.pop %v163
  %v165 = vmul.f32 %v154, 1.442695
  %v166 = vpow.pop %v165
  %v167 = vmul.f32 %v155, 1.442695
  %v168 = vpow.pop %v167
  %v169 = vmul.f32 %v156, 1.442695
  %v170 = vpow.pop %v169
  %v171 = vmul.f32 %v157, 1.442695
  %v172 = vpow.pop %v171
  %v173 = vmul.f32 %v158, 1.442695
  %v174 = vpow.pop %v173
  %v175 = vadd.f32 %v160, 1.0
  %v176 = vadd.f32 %v162, 1.0
  %v177 = vadd.f32 %v164, 1.0
  %v178 = vadd.f32 %v166, 1.0
  %v179 = vadd.f32 %v168, 1.0
  %v180 = vadd.f32 %v170, 1.0
  %v181 = vadd.f32 %v172, 1.0
  %v182 = vadd.f32 %v174, 1.0
  %v183 = vrcp.pop %v175
  %v184 = vmul.f32 %v175, %v183
  %v185 = vsub.f32 1.0, %v184
  %v186 = vmul.f32 %v183, %v185
  %v187 = vadd.f32 %v183, %v186
  %vm188 = vweird.f32 %v175
  %vm189 = vweird.f32 %v183
  %vm190 = vmor %vm188, %vm189
  %v191 = vsel %vm190, %v183, %v187
  %v192 = vand.u32 2147483647, %v175
  %vm193 = vcmp.eq.f32.partialorder %v192, 8.507059e+37
  %v194 = vand.u32 %v175, 2147483648
  %v195 = vor.u32 1.1754944e-38, %v194
  %v196 = vsel %vm193, %v195, %v191
  %v197 = vmul.f32 1.0, %v196
  %v198 = vrcp.pop %v176
  %v199 = vmul.f32 %v176, %v198
  %v200 = vsub.f32 1.0, %v199
  %v201 = vmul.f32 %v198, %v200
  %v202 = vadd.f32 %v198, %v201
  %vm203 = vweird.f32 %v176
  %vm204 = vweird.f32 %v198
  %vm205 = vmor %vm203, %vm204
  %v206 = vsel %vm205, %v198, %v202
  %v207 = vand.u32 2147483647, %v176
  %vm208 = vcmp.eq.f32.partialorder %v207, 8.507059e+37
  %v209 = vand.u32 %v176, 2147483648
  %v210 = vor.u32 1.1754944e-38, %v209
  %v211 = vsel %vm208, %v210, %v206
  %v212 = vmul.f32 1.0, %v211
  %v213 = vrcp.pop %v177
  %v214 = vmul.f32 %v177, %v213
  %v215 = vsub.f32 1.0, %v214
  %v216 = vmul.f32 %v213, %v215
  %v217 = vadd.f32 %v213, %v216
  %vm218 = vweird.f32 %v177
  %vm219 = vweird.f32 %v213
  %vm220 = vmor %vm218, %vm219
  %v221 = vsel %vm220, %v213, %v217
  %v222 = vand.u32 2147483647, %v177
  %vm223 = vcmp.eq.f32.partialorder %v222, 8.507059e+37
  %v224 = vand.u32 %v177, 2147483648
  %v225 = vor.u32 1.1754944e-38, %v224
  %v226 = vsel %vm223, %v225, %v221
  %v227 = vmul.f32 1.0, %v226
  %v228 = vrcp.pop %v178
  %v229 = vmul.f32 %v178, %v228
  %v230 = vsub.f32 1.0, %v229
  %v231 = vmul.f32 %v228, %v230
  %v232 = vadd.f32 %v228, %v231
  %vm233 = vweird.f32 %v178
  %vm234 = vweird.f32 %v228
  %vm235 = vmor %vm233, %vm234
  %v236 = vsel %vm235, %v228, %v232
  %v237 = vand.u32 2147483647, %v178
  %vm238 = vcmp.eq.f32.partialorder %v237, 8.507059e+37
  %v239 = vand.u32 %v178, 2147483648
  %v240 = vor.u32 1.1754944e-38, %v239
  %v241 = vsel %vm238, %v240, %v236
  %v242 = vmul.f32 1.0, %v241
  %v243 = vrcp.pop %v179
  %v244 = vmul.f32 %v179, %v243
  %v245 = vsub.f32 1.0, %v244
  %v246 = vmul.f32 %v243, %v245
  %v247 = vadd.f32 %v243, %v246
  %vm248 = vweird.f32 %v179
  %vm249 = vweird.f32 %v243
  %vm250 = vmor %vm248, %vm249
  %v251 = vsel %vm250, %v243, %v247
  %v252 = vand.u32 2147483647, %v179
  %vm253 = vcmp.eq.f32.partialorder %v252, 8.507059e+37
  %v254 = vand.u32 %v179, 2147483648
  %v255 = vor.u32 1.1754944e-38, %v254
  %v256 = vsel %vm253, %v255, %v251
  %v257 = vmul.f32 1.0, %v256
  %v258 = vrcp.pop %v180
  %v259 = vmul.f32 %v180, %v258
  %v260 = vsub.f32 1.0, %v259
  %v261 = vmul.f32 %v258, %v260
  %v262 = vadd.f32 %v258, %v261
  %vm263 = vweird.f32 %v180
  %vm264 = vweird.f32 %v258
  %vm265 = vmor %vm263, %vm264
  %v266 = vsel %vm265, %v258, %v262
  %v267 = vand.u32 2147483647, %v180
  %vm268 = vcmp.eq.f32.partialorder %v267, 8.507059e+37
  %v269 = vand.u32 %v180, 2147483648
  %v270 = vor.u32 1.1754944e-38, %v269
  %v271 = vsel %vm268, %v270, %v266
  %v272 = vmul.f32 1.0, %v271
  %v273 = vrcp.pop %v181
  %v274 = vmul.f32 %v181, %v273
  %v275 = vsub.f32 1.0, %v274
  %v276 = vmul.f32 %v273, %v275
  %v277 = vadd.f32 %v273, %v276
  %vm278 = vweird.f32 %v181
  %vm279 = vweird.f32 %v273
  %vm280 = vmor %vm278, %vm279
  %v281 = vsel %vm280, %v273, %v277
  %v282 = vand.u32 2147483647, %v181
  %vm283 = vcmp.eq.f32.partialorder %v282, 8.507059e+37
  %v284 = vand.u32 %v181, 2147483648
  %v285 = vor.u32 1.1754944e-38, %v284
  %v286 = vsel %vm283, %v285, %v281
  %v287 = vmul.f32 1.0, %v286
  %v288 = vrcp.pop %v182
  %v289 = vmul.f32 %v182, %v288
  %v290 = vsub.f32 1.0, %v289
  %v291 = vmul.f32 %v288, %v290
  %v292 = vadd.f32 %v288, %v291
  %vm293 = vweird.f32 %v182
  %vm294 = vweird.f32 %v288
  %vm295 = vmor %vm293, %vm294
  %v296 = vsel %vm295, %v288, %v292
  %v297 = vand.u32 2147483647, %v182
  %vm298 = vcmp.eq.f32.partialorder %v297, 8.507059e+37
  %v299 = vand.u32 %v182, 2147483648
  %v300 = vor.u32 1.1754944e-38, %v299
  %v301 = vsel %vm298, %v300, %v296
  %v302 = vmul.f32 1.0, %v301
  %v303 = vld [vmem:[%s2] sm:$0xff]
  %v304 = vld [vmem:[%s2 + $0x8] sm:$0xff]
  %v305 = vld [vmem:[%s2 + $0x10] sm:$0xff]
  %v306 = vld [vmem:[%s2 + $0x18] sm:$0xff]
  %v307 = vld [vmem:[%s2 + $0x20] sm:$0xff]
  %v308 = vld [vmem:[%s2 + $0x28] sm:$0xff]
  %v309 = vld [vmem:[%s2 + $0x30] sm:$0xff]
  %v310 = vld [vmem:[%s2 + $0x38] sm:$0xff]
  %v311 = vld [vmem:[%s6] sm:$0xff]
  %v312 = vld [vmem:[%s6 + $0x8] sm:$0xff]
  %v313 = vld [vmem:[%s6 + $0x10] sm:$0xff]
  %v314 = vld [vmem:[%s6 + $0x18] sm:$0xff]
  %316 = vset.pattern.permute.xlu0 0
  %317 = vperm.xlu0 %316, %v311
  %v318 = vpop.permute.xlu0 %317
  %321 = vset.pattern.permute.xlu0 0
  %322 = vperm.xlu0 %321, %v312
  %v323 = vpop.permute.xlu0 %322
  %326 = vset.pattern.permute.xlu0 0
  %327 = vperm.xlu0 %326, %v313
  %v328 = vpop.permute.xlu0 %327
  %331 = vset.pattern.permute.xlu0 0
  %332 = vperm.xlu0 %331, %v314
  %v333 = vpop.permute.xlu0 %332
  %v335 = vmul.f32 %v303, %v318
  %v336 = vmul.f32 %v304, %v318
  %v337 = vmul.f32 %v305, %v323
  %v338 = vmul.f32 %v306, %v323
  %v339 = vmul.f32 %v307, %v328
  %v340 = vmul.f32 %v308, %v328
  %v341 = vmul.f32 %v309, %v333
  %v342 = vmul.f32 %v310, %v333
  %v343 = vld [vmem:[%s7] sm:$0xff]
  %v344 = vld [vmem:[%s7 + $0x8] sm:$0xff]
  %v345 = vld [vmem:[%s7 + $0x10] sm:$0xff]
  %v346 = vld [vmem:[%s7 + $0x18] sm:$0xff]
  %348 = vset.pattern.permute.xlu0 0
  %349 = vperm.xlu0 %348, %v343
  %v350 = vpop.permute.xlu0 %349
  %353 = vset.pattern.permute.xlu0 0
  %354 = vperm.xlu0 %353, %v344
  %v355 = vpop.permute.xlu0 %354
  %358 = vset.pattern.permute.xlu0 0
  %359 = vperm.xlu0 %358, %v345
  %v360 = vpop.permute.xlu0 %359
  %363 = vset.pattern.permute.xlu0 0
  %364 = vperm.xlu0 %363, %v346
  %v365 = vpop.permute.xlu0 %364
  %v367 = vadd.f32 %v335, %v350
  %v368 = vadd.f32 %v336, %v350
  %v369 = vadd.f32 %v337, %v355
  %v370 = vadd.f32 %v338, %v355
  %v371 = vadd.f32 %v339, %v360
  %v372 = vadd.f32 %v340, %v360
  %v373 = vadd.f32 %v341, %v365
  %v374 = vadd.f32 %v342, %v365
  %v375 = vmul.f32 %v367, %v197
  %v376 = vmul.f32 %v368, %v212
  %v377 = vmul.f32 %v369, %v227
  %v378 = vmul.f32 %v370, %v242
  %v379 = vmul.f32 %v371, %v257
  %v380 = vmul.f32 %v372, %v272
  %v381 = vmul.f32 %v373, %v287
  %v382 = vmul.f32 %v374, %v302
  %383 = vst [vmem:[%s8] sm:$0xff] %v375
  %384 = vst [vmem:[%s8 + $0x8] sm:$0xff] %v376
  %385 = vst [vmem:[%s8 + $0x10] sm:$0xff] %v377
  %386 = vst [vmem:[%s8 + $0x18] sm:$0xff] %v378
  %387 = vst [vmem:[%s8 + $0x20] sm:$0xff] %v379
  %388 = vst [vmem:[%s8 + $0x28] sm:$0xff] %v380
  %389 = vst [vmem:[%s8 + $0x30] sm:$0xff] %v381
  %390 = vst [vmem:[%s8 + $0x38] sm:$0xff] %v382
  %v391 = vadd.f32 %v375, %v376
  %392 = vadd.xlane.f32.xlu0 %v391
  %v393 = vpop.xlane.xlu0 %392
  %v394 = vadd.f32 %v377, %v378
  %395 = vadd.xlane.f32.xlu0 %v394
  %v396 = vpop.xlane.xlu0 %395
  %v397 = vadd.f32 %v379, %v380
  %398 = vadd.xlane.f32.xlu0 %v397
  %v399 = vpop.xlane.xlu0 %398
  %v400 = vadd.f32 %v381, %v382
  %401 = vadd.xlane.f32.xlu0 %v400
  %v402 = vpop.xlane.xlu0 %401
  %v403 = vmul.f32 %v393, 0.00390625
  %v404 = vmul.f32 %v396, 0.00390625
  %v405 = vmul.f32 %v399, 0.00390625
  %v406 = vmul.f32 %v402, 0.00390625
  %v407 = vsub.f32 %v375, %v403
  %v408 = vsub.f32 %v376, %v403
  %v409 = vsub.f32 %v377, %v404
  %v410 = vsub.f32 %v378, %v404
  %v411 = vsub.f32 %v379, %v405
  %v412 = vsub.f32 %v380, %v405
  %v413 = vsub.f32 %v381, %v406
  %v414 = vsub.f32 %v382, %v406
  %v415 = vmul.f32 %v407, %v407
  %v416 = vmul.f32 %v408, %v408
  %v417 = vmul.f32 %v409, %v409
  %v418 = vmul.f32 %v410, %v410
  %v419 = vmul.f32 %v411, %v411
  %v420 = vmul.f32 %v412, %v412
  %v421 = vmul.f32 %v413, %v413
  %v422 = vmul.f32 %v414, %v414
  %v423 = vadd.f32 %v415, %v416
  %424 = vadd.xlane.f32.xlu0 %v423
  %v425 = vpop.xlane.xlu0 %424
  %v426 = vadd.f32 %v417, %v418
  %427 = vadd.xlane.f32.xlu0 %v426
  %v428 = vpop.xlane.xlu0 %427
  %v429 = vadd.f32 %v419, %v420
  %430 = vadd.xlane.f32.xlu0 %v429
  %v431 = vpop.xlane.xlu0 %430
  %v432 = vadd.f32 %v421, %v422
  %433 = vadd.xlane.f32.xlu0 %v432
  %v434 = vpop.xlane.xlu0 %433
  %vm435 = vcmask 7168
  %v436 = vsel %vm435, %v393, %v425
  %v437 = vsel %vm435, %v396, %v428
  %v438 = vsel %vm435, %v399, %v431
  %v439 = vsel %vm435, %v402, %v434
  %vm440 = vcmask 15360
  %441 = vst.msk [vmem:[%s9] sm:$0xff] %vm440, %v436
  %442 = vst.msk [vmem:[%s9 + $0x8] sm:$0xff] %vm440, %v437
  %443 = vst.msk [vmem:[%s9 + $0x10] sm:$0xff] %vm440, %v438
  %444 = vst.msk [vmem:[%s9 + $0x18] sm:$0xff] %vm440, %v439
  // Predicated region
  $region34: #{grcl_unit_forward.4} parent=0 // pred_check
    _
  $region35: #{grcl_unit_forward.4} parent=0 // pred_check_branch
    %446 = sbr.rel (0) target = $region37
  $region36: #{grcl_unit_forward.4} parent=0 // pred_region
    _
  $region37: #{grcl_unit_forward.4} parent=0 // pred_fallthru
    _
  // Predicated region
  $region38: #{grcl_unit_forward.4} parent=0 // pred_check
    _
  $region39: #{grcl_unit_forward.4} parent=0 // pred_check_branch
    %448 = sbr.rel (0) target = $region41
  $region40: #{grcl_unit_forward.4} parent=0 // pred_region
    _
  $region41: #{grcl_unit_forward.4} parent=0 // pred_fallthru
    _
  // Predicated region
  $region42: #{grcl_unit_forward.4} parent=0 // pred_check
    _
  $region43: #{grcl_unit_forward.4} parent=0 // pred_check_branch
    %450 = sbr.rel (0) target = $region45
  $region44: #{grcl_unit_forward.4} parent=0 // pred_region
    _
  $region45: #{grcl_unit_forward.4} parent=0 // pred_fallthru
    _
  // Predicated region
  $region46: #{grcl_unit_forward.4} parent=0 // pred_check
    _
  $region47: #{grcl_unit_forward.4} parent=0 // pred_check_branch
    %452 = sbr.rel (0) target = $region49
  $region48: #{grcl_unit_forward.4} parent=0 // pred_region
    _
  $region49: #{grcl_unit_forward.4} parent=0 // pred_fallthru
    _

</llo_original>
